<compile_context>
chip_gen: v5e
topology: v5e:2x2
jax: 0.10.0
libtpu: 0.0.40
codegen_flags: <defaults>
</compile_context>

<pallas_src>
import jax
import jax.numpy as jnp
from jax import lax
from jax.experimental import pallas as pl
from jax.experimental.pallas import tpu as pltpu

C1, C2 = 31, 62  # channel counts fixed by the module


def _make_kernel(L3, L4u, compute_dtype):
    cd = compute_dtype

    def kernel(x_ref, w1_ref, c1_ref, w2_ref, c2_ref, bn3_ref,
               w3_ref, c4_ref, bn5_ref, wfc1_ref, c6_ref,
               wfc2_ref, bfc2_ref, out_ref):
        f32 = jnp.float32

        def dot(a, w_ref):
            # MXU matmul: operands in compute dtype (bf16 by default),
            # accumulation in f32.  Each activation slab feeds exactly one
            # dot, so this cast happens once per slab.
            return jnp.dot(a.astype(cd), w_ref[...], preferred_element_type=f32)

        # ---- Conv1d(1,31,k=5,s=2) [BN1 scale folded, im2col folded into the
        # structured weight] + per-channel shift (tiled over positions) + ReLU.
        h1 = jnp.maximum(dot(x_ref[...], w1_ref) + c1_ref[...], 0.0)   # [TB, L1*31]

        # ---- Conv1d(31,31,k=5,s=2) [BN2 scale folded]: all 5 taps fused into
        # one structured matmul (deep-K), shift, ReLU.
        h2 = jnp.maximum(dot(h1, w2_ref) + c2_ref[...], 0.0)           # [TB, L2*31]

        # ---- MaxPool1d(3,2) over positions via lane-block maxes, then
        # BN3 (scale+shift, cannot be folded) + ReLU.
        blocks = []
        for t in range(L3):
            m = h2[:, 2 * t * C1:(2 * t + 1) * C1]
            for j in (1, 2):
                m = jnp.maximum(m, h2[:, (2 * t + j) * C1:(2 * t + j + 1) * C1])
            blocks.append(m)
        p = blocks[0] if L3 == 1 else jnp.concatenate(blocks, axis=1)  # [TB, L3*31]
        p = jnp.maximum(p * bn3_ref[0:1, :] + bn3_ref[1:2, :], 0.0)

        # ---- Conv1d(31,62,k=3,pad=2) [BN4 scale folded]: padding handled by
        # the structured weight (zero taps simply absent); only the positions
        # consumed by the final maxpool are produced.  Shift, ReLU.
        h4 = jnp.maximum(dot(p, w3_ref) + c4_ref[...], 0.0)            # [TB, L4u*62]

        # ---- MaxPool1d(3,2) -> single spatial position, ReLU, BN5.
        m = h4[:, 0:C2]
        for t in range(1, L4u):
            m = jnp.maximum(m, h4[:, t * C2:(t + 1) * C2])
        m = jnp.maximum(m, 0.0)            # explicit ReLU (kept for fidelity)
        code = m * bn5_ref[0:1, :] + bn5_ref[1:2, :]                   # [TB, 62]

        # ---- reggresor: Linear(62,124,no bias) [BN6 scale folded] + shift +
        # ReLU, then Linear(124, OUT_PAD) + bias.  OUT_PAD -> lane-dense store.
        h = jnp.maximum(dot(code, wfc1_ref) + c6_ref[...], 0.0)        # [TB, 124]
        out_ref[...] = dot(h, wfc2_ref) + bfc2_ref[...]                # [TB, 128]

    return kernel


def _pick_batch_tile(B, tb_max):
    # Multiple of 8 sublanes, capped at tb_max, and >= 2 grid steps whenever
    # the batch allows it so both v7x TensorCores get work.
    b8 = max(8, ((B + 7) // 8) * 8)
    return min(tb_max, max(8, ((b8 // 2 + 7) // 8) * 8))


def cnn_encoder_forward(x, params, output_size, tb_max=512,
                        compute_dtype=jnp.bfloat16):
    """x: [B, 1, L] float32 (PyTorch NCL layout).  Eval-mode BatchNorm."""
    B, c_in, L = x.shape
    assert c_in == 1
    # Static spatial sizes implied by the module.
    L1 = (L - 5) // 2 + 1            # Conv1d(1, 31, k=5, s=2)
    L2 = (L1 - 5) // 2 + 1           # Conv1d(31, 31, k=5, s=2)
    L3 = (L2 - 3) // 2 + 1           # MaxPool1d(k=3, s=2)
    L4 = L3 + 2 * 2 - 3 + 1          # Conv1d(31, 62, k=3, pad=2, s=1)
    L5 = (L4 - 3) // 2 + 1           # MaxPool1d(k=3, s=2)
    # Flatten -> Linear(62, 124) only works if the final spatial extent is 1.
    assert L5 == 1, "input length must give a final cnn spatial extent of 1"
    L4u = min(L4, 3)                 # conv3 positions the final maxpool reads

    eps = 1e-5
    f32 = jnp.float32

    TB = _pick_batch_tile(B, tb_max)
    B_pad = ((B + TB - 1) // TB) * TB
    nb = B_pad // TB
    OUT_PAD = ((output_size + 127) // 128) * 128

    # ---- fold BN (eval mode) into per-channel scale/shift --------------------
    def fold(bn):
        gamma, beta, mean, var = bn
        s = gamma / jnp.sqrt(var + eps)
        return s, beta - mean * s

    s1, sh1 = fold(params["bn1"]); s2, sh2 = fold(params["bn2"])
    s3, sh3 = fold(params["bn3"]); s4, sh4 = fold(params["bn4"])
    s5, sh5 = fold(params["bn5"]); s6, sh6 = fold(params["bn6"])

    # ---- structured weights: im2col / taps / zero-padding folded in, and
    # BN scales folded into the bias-free conv / fc weights --------------------
    w1t = jnp.transpose(params["w1"][:, 0, :], (1, 0)) * s1[None, :]      # [5,31]
    W1 = jnp.zeros((L, L1 * C1), f32)
    for t in range(L1):
        W1 = W1.at[2 * t:2 * t + 5, t * C1:(t + 1) * C1].set(w1t)

    w2t = jnp.transpose(params["w2"], (2, 1, 0)) * s2[None, None, :]      # [5,31,31]
    W2 = jnp.zeros((L1 * C1, L2 * C1), f32)
    for t in range(L2):
        for k in range(5):
            W2 = W2.at[(2 * t + k) * C1:(2 * t + k + 1) * C1,
                       t * C1:(t + 1) * C1].set(w2t[k])

    w3t = jnp.transpose(params["w3"], (2, 1, 0)) * s4[None, None, :]      # [3,31,62]
    W3 = jnp.zeros((L3 * C1, L4u * C2), f32)
    for t in range(L4u):
        for k in range(3):
            j = t + k - 2            # conv3 padding=2 folded here
            if 0 <= j < L3:
                W3 = W3.at[j * C1:(j + 1) * C1, t * C2:(t + 1) * C2].set(w3t[k])

    wfc1 = jnp.transpose(params["wfc1"], (1, 0)) * s6[None, :]            # [62,124]
    wfc2 = jnp.transpose(params["wfc2"], (1, 0))                          # [124,out]
    wfc2 = jnp.pad(wfc2, ((0, 0), (0, OUT_PAD - output_size)))            # [124,128]
    bfc2 = jnp.pad(params["bfc2"], (0, OUT_PAD - output_size))[None, :]   # [1,128]

    # Shifts / BN constants stay f32 (elementwise path).
    c1 = jnp.tile(sh1, (L1,))[None, :].astype(f32)                        # [1, L1*31]
    c2 = jnp.tile(sh2, (L2,))[None, :].astype(f32)                        # [1, L2*31]
    bn3 = jnp.stack([jnp.tile(s3, (L3,)), jnp.tile(sh3, (L3,))], 0).astype(f32)
    c4 = jnp.tile(sh4, (L4u,))[None, :].astype(f32)                       # [1, L4u*62]
    bn5 = jnp.stack([s5, sh5], axis=0).astype(f32)                        # [2, 62]
    c6 = sh6[None, :].astype(f32)                                         # [1, 124]

    # MXU operands in compute dtype (bf16 by default on v5e/v6e/v7x).
    W1 = W1.astype(compute_dtype); W2 = W2.astype(compute_dtype)
    W3 = W3.astype(compute_dtype)
    wfc1 = wfc1.astype(compute_dtype); wfc2 = wfc2.astype(compute_dtype)
    bfc2 = bfc2.astype(f32)

    # Raw input tile — no wrapper-side im2col / gather; input stays f32 in HBM.
    x_in = jnp.pad(x[:, 0, :], ((0, B_pad - B), (0, 0)))                  # [B_pad, L]

    args = (x_in, W1, c1, W2, c2, bn3, W3, c4, bn5, wfc1, c6, wfc2, bfc2)

    def resident(a):
        # Whole array, constant block index -> VMEM-resident across the grid
        # (Pallas skips the re-DMA when the block index does not change).
        return pl.BlockSpec(a.shape, lambda i, _nd=a.ndim: (0,) * _nd)

    in_specs = ([pl.BlockSpec((TB, L), lambda i: (i, 0))]
                + [resident(a) for a in args[1:]])
    out_specs = pl.BlockSpec((TB, OUT_PAD), lambda i: (i, 0))

    out = pl.pallas_call(
        _make_kernel(L3, L4u, compute_dtype),
        out_shape=jax.ShapeDtypeStruct((B_pad, OUT_PAD), f32),
        grid=(nb,),
        in_specs=in_specs,
        out_specs=out_specs,
        compiler_params=pltpu.CompilerParams(
            dimension_semantics=("parallel",)),
    )(*args)

    return out[:B, :output_size]


def init_params(key, output_size):
    ks = jax.random.split(key, 12)

    def w(k, shape, scale=0.2):
        return scale * jax.random.normal(k, shape, jnp.float32)

    def bn(k, c):
        k1, k2, k3, k4 = jax.random.split(k, 4)
        gamma = 1.0 + 0.1 * jax.random.normal(k1, (c,), jnp.float32)
        beta = 0.1 * jax.random.normal(k2, (c,), jnp.float32)
        mean = 0.1 * jax.random.normal(k3, (c,), jnp.float32)
        var = jax.random.uniform(k4, (c,), jnp.float32, minval=0.5, maxval=1.5)
        return (gamma, beta, mean, var)

    return {
        "w1": w(ks[0], (31, 1, 5)),          # torch Conv1d weight [C_out, C_in, K]
        "w2": w(ks[1], (31, 31, 5)),
        "w3": w(ks[2], (62, 31, 3)),
        "wfc1": w(ks[3], (124, 62)),         # torch Linear weight [out, in]
        "wfc2": w(ks[4], (output_size, 124)),
        "bfc2": w(ks[5], (output_size,)),
        "bn1": bn(ks[6], 31),
        "bn2": bn(ks[7], 31),
        "bn3": bn(ks[8], 31),
        "bn4": bn(ks[9], 62),
        "bn5": bn(ks[10], 62),
        "bn6": bn(ks[11], 124),
    }


def ref_forward(x, params, output_size):
    """Plain-JAX reference mirroring the PyTorch forward (eval-mode BN)."""
    eps = 1e-5

    def conv1d(h, w, stride, padding):
        return lax.conv_general_dilated(
            h, w, window_strides=(stride,), padding=[(padding, padding)],
            dimension_numbers=("NCH", "OIH", "NCH"))

    def bn_apply(h, bn_tuple):
        gamma, beta, mean, var = bn_tuple
        scale = gamma / jnp.sqrt(var + eps)
        shift = beta - mean * scale
        if h.ndim == 3:
            return h * scale[None, :, None] + shift[None, :, None]
        return h * scale[None, :] + shift[None, :]

    def maxpool(h, k, s):
        Lo = (h.shape[-1] - k) // s + 1
        return jnp.stack(
            [jnp.max(h[:, :, t * s:t * s + k], axis=-1) for t in range(Lo)],
            axis=-1)

    relu = lambda v: jnp.maximum(v, 0.0)

    h = conv1d(x, params["w1"], 2, 0)
    h = relu(bn_apply(h, params["bn1"]))
    h = conv1d(h, params["w2"], 2, 0)
    h = relu(bn_apply(h, params["bn2"]))
    h = maxpool(h, 3, 2)
    h = relu(bn_apply(h, params["bn3"]))
    h = conv1d(h, params["w3"], 1, 2)
    h = relu(bn_apply(h, params["bn4"]))
    h = maxpool(h, 3, 2)
    h = relu(h)
    h = bn_apply(h, params["bn5"])
    code = h.reshape(x.shape[0], -1)                       # [B, 62]
    code = code @ params["wfc1"].T
    code = relu(bn_apply(code, params["bn6"]))
    code = code @ params["wfc2"].T + params["bfc2"][None, :]
    return code


if __name__ == "__main__":
    B, L = 4, 30              # L=30 -> final cnn spatial extent 1 (required)
    hidden_size = 32          # stored by the module but unused in forward
    output_size = 10

    key = jax.random.PRNGKey(0)
    kx, kp = jax.random.split(key)
    x = jax.random.normal(kx, (B, 1, L), jnp.float32)
    params = init_params(kp, output_size)

    fwd = jax.jit(cnn_encoder_forward,
                  static_argnames=("output_size", "tb_max", "compute_dtype"))

    ref = ref_forward(x, params, output_size)

    # Strict validation path: f32 MXU operands.
    out = jax.block_until_ready(
        fwd(x, params, output_size=output_size, compute_dtype=jnp.float32))
    assert out.shape == (B, output_size)
    if not bool(jnp.allclose(out, ref, atol=1e-4, rtol=1e-4)):
        raise AssertionError(
            f"kernel/reference mismatch (f32), max abs diff = "
            f"{float(jnp.max(jnp.abs(out - ref)))}")

    # Default (bf16 MXU-operand) path: must run and stay close to reference.
    out_bf16 = jax.block_until_ready(fwd(x, params, output_size=output_size))
    if (not bool(jnp.all(jnp.isfinite(out_bf16)))
            or float(jnp.max(jnp.abs(out_bf16 - ref))) > 0.5):
        raise AssertionError(
            f"kernel/reference mismatch (bf16), max abs diff = "
            f"{float(jnp.max(jnp.abs(out_bf16 - ref)))}")

    print("KERNEL_OK")
</pallas_src>

<mosaic_0001>
module attributes {stable_mosaic.version = 11 : i64} {
  func.func @kernel(%arg0: i32, %arg1: memref<8x30xf32, #tpu.memory_space<vmem>>, %arg2: memref<30x403xf32, #tpu.memory_space<vmem>>, %arg3: memref<1x403xf32, #tpu.memory_space<vmem>>, %arg4: memref<403x155xf32, #tpu.memory_space<vmem>>, %arg5: memref<1x155xf32, #tpu.memory_space<vmem>>, %arg6: memref<2x62xf32, #tpu.memory_space<vmem>>, %arg7: memref<62x186xf32, #tpu.memory_space<vmem>>, %arg8: memref<1x186xf32, #tpu.memory_space<vmem>>, %arg9: memref<2x62xf32, #tpu.memory_space<vmem>>, %arg10: memref<62x124xf32, #tpu.memory_space<vmem>>, %arg11: memref<1x124xf32, #tpu.memory_space<vmem>>, %arg12: memref<124x128xf32, #tpu.memory_space<vmem>>, %arg13: memref<1x128xf32, #tpu.memory_space<vmem>>, %arg14: memref<8x128xf32, #tpu.memory_space<vmem>>) attributes {dimension_semantics = [#tpu.dimension_semantics<parallel>], iteration_bounds = array<i64: 1>, scalar_prefetch = 0 : i64, scratch_operands = 0 : i64, tpu.core_type = #tpu.core_type<tc>, window_params = [{transform_indices = @transform_0, window_bounds = array<i64: 8, 30>}, {pipeline_mode = #tpu.pipeline_mode<synchronous>, transform_indices = @transform_1, window_bounds = array<i64: 30, 403>}, {pipeline_mode = #tpu.pipeline_mode<synchronous>, transform_indices = @transform_2, window_bounds = array<i64: 1, 403>}, {pipeline_mode = #tpu.pipeline_mode<synchronous>, transform_indices = @transform_3, window_bounds = array<i64: 403, 155>}, {pipeline_mode = #tpu.pipeline_mode<synchronous>, transform_indices = @transform_4, window_bounds = array<i64: 1, 155>}, {pipeline_mode = #tpu.pipeline_mode<synchronous>, transform_indices = @transform_5, window_bounds = array<i64: 2, 62>}, {pipeline_mode = #tpu.pipeline_mode<synchronous>, transform_indices = @transform_6, window_bounds = array<i64: 62, 186>}, {pipeline_mode = #tpu.pipeline_mode<synchronous>, transform_indices = @transform_7, window_bounds = array<i64: 1, 186>}, {pipeline_mode = #tpu.pipeline_mode<synchronous>, transform_indices = @transform_8, window_bounds = array<i64: 2, 62>}, {pipeline_mode = #tpu.pipeline_mode<synchronous>, transform_indices = @transform_9, window_bounds = array<i64: 62, 124>}, {pipeline_mode = #tpu.pipeline_mode<synchronous>, transform_indices = @transform_10, window_bounds = array<i64: 1, 124>}, {pipeline_mode = #tpu.pipeline_mode<synchronous>, transform_indices = @transform_11, window_bounds = array<i64: 124, 128>}, {pipeline_mode = #tpu.pipeline_mode<synchronous>, transform_indices = @transform_12, window_bounds = array<i64: 1, 128>}, {transform_indices = @transform_13, window_bounds = array<i64: 8, 128>}]} {
    %c0 = arith.constant 0 : index
    %c0_0 = arith.constant 0 : index
    %0 = vector.load %arg1[%c0, %c0_0] : memref<8x30xf32, #tpu.memory_space<vmem>>, vector<8x30xf32>
    %c0_1 = arith.constant 0 : index
    %c0_2 = arith.constant 0 : index
    %1 = vector.load %arg2[%c0_1, %c0_2] : memref<30x403xf32, #tpu.memory_space<vmem>>, vector<30x403xf32>
    %cst = arith.constant dense<0.000000e+00> : vector<8x403xf32>
    %2 = tpu.matmul %0, %1, %cst {dimension_numbers = #tpu.dot_dimension_numbers<[1], [0], [0], [1], [0, 0, 1, 1], [], []>} : vector<8x30xf32>, vector<30x403xf32>, vector<8x403xf32> -> vector<8x403xf32>
    %c0_3 = arith.constant 0 : index
    %c0_4 = arith.constant 0 : index
    %3 = vector.load %arg3[%c0_3, %c0_4] : memref<1x403xf32, #tpu.memory_space<vmem>>, vector<1x403xf32>
    %4 = vector.broadcast %3 : vector<1x403xf32> to vector<8x403xf32>
    %5 = arith.addf %2, %4 : vector<8x403xf32>
    %cst_5 = arith.constant 0.000000e+00 : f32
    %6 = vector.broadcast %cst_5 : f32 to vector<8x403xf32>
    %7 = arith.maximumf %5, %6 : vector<8x403xf32>
    %c0_6 = arith.constant 0 : index
    %c0_7 = arith.constant 0 : index
    %8 = vector.load %arg4[%c0_6, %c0_7] : memref<403x155xf32, #tpu.memory_space<vmem>>, vector<403x155xf32>
    %cst_8 = arith.constant dense<0.000000e+00> : vector<8x155xf32>
    %9 = tpu.matmul %7, %8, %cst_8 {dimension_numbers = #tpu.dot_dimension_numbers<[1], [0], [0], [1], [0, 0, 1, 1], [], []>} : vector<8x403xf32>, vector<403x155xf32>, vector<8x155xf32> -> vector<8x155xf32>
    %c0_9 = arith.constant 0 : index
    %c0_10 = arith.constant 0 : index
    %10 = vector.load %arg5[%c0_9, %c0_10] : memref<1x155xf32, #tpu.memory_space<vmem>>, vector<1x155xf32>
    %11 = vector.broadcast %10 : vector<1x155xf32> to vector<8x155xf32>
    %12 = arith.addf %9, %11 : vector<8x155xf32>
    %cst_11 = arith.constant 0.000000e+00 : f32
    %13 = vector.broadcast %cst_11 : f32 to vector<8x155xf32>
    %14 = arith.maximumf %12, %13 : vector<8x155xf32>
    %15 = vector.extract_strided_slice %14 {offsets = [0, 0], sizes = [8, 31], strides = [1, 1]} : vector<8x155xf32> to vector<8x31xf32>
    %16 = vector.extract_strided_slice %14 {offsets = [0, 31], sizes = [8, 31], strides = [1, 1]} : vector<8x155xf32> to vector<8x31xf32>
    %17 = arith.maximumf %15, %16 : vector<8x31xf32>
    %18 = vector.extract_strided_slice %14 {offsets = [0, 62], sizes = [8, 31], strides = [1, 1]} : vector<8x155xf32> to vector<8x31xf32>
    %19 = arith.maximumf %17, %18 : vector<8x31xf32>
    %20 = vector.extract_strided_slice %14 {offsets = [0, 62], sizes = [8, 31], strides = [1, 1]} : vector<8x155xf32> to vector<8x31xf32>
    %21 = vector.extract_strided_slice %14 {offsets = [0, 93], sizes = [8, 31], strides = [1, 1]} : vector<8x155xf32> to vector<8x31xf32>
    %22 = arith.maximumf %20, %21 : vector<8x31xf32>
    %23 = vector.extract_strided_slice %14 {offsets = [0, 124], sizes = [8, 31], strides = [1, 1]} : vector<8x155xf32> to vector<8x31xf32>
    %24 = arith.maximumf %22, %23 : vector<8x31xf32>
    %25 = tpu.concatenate %19, %24 in 1 : vector<8x31xf32>, vector<8x31xf32> -> vector<8x62xf32>
    %c0_12 = arith.constant 0 : index
    %c0_13 = arith.constant 0 : index
    %26 = vector.load %arg6[%c0_12, %c0_13] : memref<2x62xf32, #tpu.memory_space<vmem>>, vector<1x62xf32>
    %27 = vector.broadcast %26 : vector<1x62xf32> to vector<8x62xf32>
    %28 = arith.mulf %25, %27 : vector<8x62xf32>
    %c1 = arith.constant 1 : index
    %c0_14 = arith.constant 0 : index
    %29 = vector.load %arg6[%c1, %c0_14] : memref<2x62xf32, #tpu.memory_space<vmem>>, vector<1x62xf32>
    %30 = vector.broadcast %29 : vector<1x62xf32> to vector<8x62xf32>
    %31 = arith.addf %28, %30 : vector<8x62xf32>
    %cst_15 = arith.constant 0.000000e+00 : f32
    %32 = vector.broadcast %cst_15 : f32 to vector<8x62xf32>
    %33 = arith.maximumf %31, %32 : vector<8x62xf32>
    %c0_16 = arith.constant 0 : index
    %c0_17 = arith.constant 0 : index
    %34 = vector.load %arg7[%c0_16, %c0_17] : memref<62x186xf32, #tpu.memory_space<vmem>>, vector<62x186xf32>
    %cst_18 = arith.constant dense<0.000000e+00> : vector<8x186xf32>
    %35 = tpu.matmul %33, %34, %cst_18 {dimension_numbers = #tpu.dot_dimension_numbers<[1], [0], [0], [1], [0, 0, 1, 1], [], []>} : vector<8x62xf32>, vector<62x186xf32>, vector<8x186xf32> -> vector<8x186xf32>
    %c0_19 = arith.constant 0 : index
    %c0_20 = arith.constant 0 : index
    %36 = vector.load %arg8[%c0_19, %c0_20] : memref<1x186xf32, #tpu.memory_space<vmem>>, vector<1x186xf32>
    %37 = vector.broadcast %36 : vector<1x186xf32> to vector<8x186xf32>
    %38 = arith.addf %35, %37 : vector<8x186xf32>
    %cst_21 = arith.constant 0.000000e+00 : f32
    %39 = vector.broadcast %cst_21 : f32 to vector<8x186xf32>
    %40 = arith.maximumf %38, %39 : vector<8x186xf32>
    %41 = vector.extract_strided_slice %40 {offsets = [0, 0], sizes = [8, 62], strides = [1, 1]} : vector<8x186xf32> to vector<8x62xf32>
    %42 = vector.extract_strided_slice %40 {offsets = [0, 62], sizes = [8, 62], strides = [1, 1]} : vector<8x186xf32> to vector<8x62xf32>
    %43 = arith.maximumf %41, %42 : vector<8x62xf32>
    %44 = vector.extract_strided_slice %40 {offsets = [0, 124], sizes = [8, 62], strides = [1, 1]} : vector<8x186xf32> to vector<8x62xf32>
    %45 = arith.maximumf %43, %44 : vector<8x62xf32>
    %cst_22 = arith.constant 0.000000e+00 : f32
    %46 = vector.broadcast %cst_22 : f32 to vector<8x62xf32>
    %47 = arith.maximumf %45, %46 : vector<8x62xf32>
    %c0_23 = arith.constant 0 : index
    %c0_24 = arith.constant 0 : index
    %48 = vector.load %arg9[%c0_23, %c0_24] : memref<2x62xf32, #tpu.memory_space<vmem>>, vector<1x62xf32>
    %49 = vector.broadcast %48 : vector<1x62xf32> to vector<8x62xf32>
    %50 = arith.mulf %47, %49 : vector<8x62xf32>
    %c1_25 = arith.constant 1 : index
    %c0_26 = arith.constant 0 : index
    %51 = vector.load %arg9[%c1_25, %c0_26] : memref<2x62xf32, #tpu.memory_space<vmem>>, vector<1x62xf32>
    %52 = vector.broadcast %51 : vector<1x62xf32> to vector<8x62xf32>
    %53 = arith.addf %50, %52 : vector<8x62xf32>
    %c0_27 = arith.constant 0 : index
    %c0_28 = arith.constant 0 : index
    %54 = vector.load %arg10[%c0_27, %c0_28] : memref<62x124xf32, #tpu.memory_space<vmem>>, vector<62x124xf32>
    %cst_29 = arith.constant dense<0.000000e+00> : vector<8x124xf32>
    %55 = tpu.matmul %53, %54, %cst_29 {dimension_numbers = #tpu.dot_dimension_numbers<[1], [0], [0], [1], [0, 0, 1, 1], [], []>} : vector<8x62xf32>, vector<62x124xf32>, vector<8x124xf32> -> vector<8x124xf32>
    %c0_30 = arith.constant 0 : index
    %c0_31 = arith.constant 0 : index
    %56 = vector.load %arg11[%c0_30, %c0_31] : memref<1x124xf32, #tpu.memory_space<vmem>>, vector<1x124xf32>
    %57 = vector.broadcast %56 : vector<1x124xf32> to vector<8x124xf32>
    %58 = arith.addf %55, %57 : vector<8x124xf32>
    %cst_32 = arith.constant 0.000000e+00 : f32
    %59 = vector.broadcast %cst_32 : f32 to vector<8x124xf32>
    %60 = arith.maximumf %58, %59 : vector<8x124xf32>
    %c0_33 = arith.constant 0 : index
    %c0_34 = arith.constant 0 : index
    %61 = vector.load %arg12[%c0_33, %c0_34] : memref<124x128xf32, #tpu.memory_space<vmem>>, vector<124x128xf32>
    %cst_35 = arith.constant dense<0.000000e+00> : vector<8x128xf32>
    %62 = tpu.matmul %60, %61, %cst_35 {dimension_numbers = #tpu.dot_dimension_numbers<[1], [0], [0], [1], [0, 0, 1, 1], [], []>} : vector<8x124xf32>, vector<124x128xf32>, vector<8x128xf32> -> vector<8x128xf32>
    %c0_36 = arith.constant 0 : index
    %c0_37 = arith.constant 0 : index
    %63 = vector.load %arg13[%c0_36, %c0_37] : memref<1x128xf32, #tpu.memory_space<vmem>>, vector<1x128xf32>
    %64 = vector.broadcast %63 : vector<1x128xf32> to vector<8x128xf32>
    %65 = arith.addf %62, %64 : vector<8x128xf32>
    %c0_38 = arith.constant 0 : index
    %c0_39 = arith.constant 0 : index
    %66 = vector.load %arg14[%c0_38, %c0_39] : memref<8x128xf32, #tpu.memory_space<vmem>>, vector<8x128xf32>
    tpu.vector_store %arg14[%c0_38, %c0_39], %65 {strides = array<i32>} : memref<8x128xf32, #tpu.memory_space<vmem>>, vector<8x128xf32>,
    return
  }
  func.func @transform_0(%arg0: i32) -> (i32, i32) {
    %c0_i32 = arith.constant 0 : i32
    %c0_i32_0 = arith.constant 0 : i32
    return %arg0, %c0_i32 : i32, i32
  }
  func.func @transform_1(%arg0: i32) -> (i32, i32) {
    %c0_i32 = arith.constant 0 : i32
    %c0_i32_0 = arith.constant 0 : i32
    %c0_i32_1 = arith.constant 0 : i32
    return %c0_i32, %c0_i32_0 : i32, i32
  }
  func.func @transform_2(%arg0: i32) -> (i32, i32) {
    %c0_i32 = arith.constant 0 : i32
    %c0_i32_0 = arith.constant 0 : i32
    %c0_i32_1 = arith.constant 0 : i32
    return %c0_i32, %c0_i32_0 : i32, i32
  }
  func.func @transform_3(%arg0: i32) -> (i32, i32) {
    %c0_i32 = arith.constant 0 : i32
    %c0_i32_0 = arith.constant 0 : i32
    %c0_i32_1 = arith.constant 0 : i32
    return %c0_i32, %c0_i32_0 : i32, i32
  }
  func.func @transform_4(%arg0: i32) -> (i32, i32) {
    %c0_i32 = arith.constant 0 : i32
    %c0_i32_0 = arith.constant 0 : i32
    %c0_i32_1 = arith.constant 0 : i32
    return %c0_i32, %c0_i32_0 : i32, i32
  }
  func.func @transform_5(%arg0: i32) -> (i32, i32) {
    %c0_i32 = arith.constant 0 : i32
    %c0_i32_0 = arith.constant 0 : i32
    %c0_i32_1 = arith.constant 0 : i32
    return %c0_i32, %c0_i32_0 : i32, i32
  }
  func.func @transform_6(%arg0: i32) -> (i32, i32) {
    %c0_i32 = arith.constant 0 : i32
    %c0_i32_0 = arith.constant 0 : i32
    %c0_i32_1 = arith.constant 0 : i32
    return %c0_i32, %c0_i32_0 : i32, i32
  }
  func.func @transform_7(%arg0: i32) -> (i32, i32) {
    %c0_i32 = arith.constant 0 : i32
    %c0_i32_0 = arith.constant 0 : i32
    %c0_i32_1 = arith.constant 0 : i32
    return %c0_i32, %c0_i32_0 : i32, i32
  }
  func.func @transform_8(%arg0: i32) -> (i32, i32) {
    %c0_i32 = arith.constant 0 : i32
    %c0_i32_0 = arith.constant 0 : i32
    %c0_i32_1 = arith.constant 0 : i32
    return %c0_i32, %c0_i32_0 : i32, i32
  }
  func.func @transform_9(%arg0: i32) -> (i32, i32) {
    %c0_i32 = arith.constant 0 : i32
    %c0_i32_0 = arith.constant 0 : i32
    %c0_i32_1 = arith.constant 0 : i32
    return %c0_i32, %c0_i32_0 : i32, i32
  }
  func.func @transform_10(%arg0: i32) -> (i32, i32) {
    %c0_i32 = arith.constant 0 : i32
    %c0_i32_0 = arith.constant 0 : i32
    %c0_i32_1 = arith.constant 0 : i32
    return %c0_i32, %c0_i32_0 : i32, i32
  }
  func.func @transform_11(%arg0: i32) -> (i32, i32) {
    %c0_i32 = arith.constant 0 : i32
    %c0_i32_0 = arith.constant 0 : i32
    %c0_i32_1 = arith.constant 0 : i32
    return %c0_i32, %c0_i32_0 : i32, i32
  }
  func.func @transform_12(%arg0: i32) -> (i32, i32) {
    %c0_i32 = arith.constant 0 : i32
    %c0_i32_0 = arith.constant 0 : i32
    %c0_i32_1 = arith.constant 0 : i32
    return %c0_i32, %c0_i32_0 : i32, i32
  }
  func.func @transform_13(%arg0: i32) -> (i32, i32) {
    %c0_i32 = arith.constant 0 : i32
    %c0_i32_0 = arith.constant 0 : i32
    return %arg0, %c0_i32 : i32, i32
  }
}

</mosaic_0001>

<llo_original>
// kernel: tile.38
$region0: #{tile.38}
  #allocation0 [shape = 's32[1]{0}', space=sflag, size = 0x4, scoped, tag = 'scoped memory for tile.38']
  %s0 = inlined_call_operand.vmem [shape: f32[31], index: 0, kind: input, shape index: {}]
  %s1 = inlined_call_operand.vmem [shape: f32[2,31], index: 1, kind: output, shape index: {}]
  // Predicated region
  $region2: #{tile.38} parent=0 // pred_check
    _
  $region3: #{tile.38} parent=0 // pred_check_branch
    %3 = sbr.rel (0) target = $region5
  $region4: #{tile.38} parent=0 // pred_region
    _
  $region5: #{tile.38} parent=0 // pred_fallthru
    _
  %v4 = vld [vmem:[%s0] ss:$0 sm:$0xff]
  %5 = vst [vmem:[%s1] sm:$0x3] %v4

// kernel: tile.43
$region0: #{tile.43}
  %s0 = inlined_call_operand.vmem [shape: f32[2,31], index: 0, kind: input, shape index: {}]
  %s1 = inlined_call_operand.vmem [shape: f32[1,62], index: 1, kind: output, shape index: {}]
  $region1: #{tile.43} parent=0
    #allocation0 [shape = 'u8[4096]{0}', space=vmem, size = 0x1000, scoped, tag = 'scoped mem for output reshape']
    #allocation1 [shape = 'u8[4096]{0}', space=vmem, size = 0x1000, scoped, tag = 'scoped mem for input reshape']
    %s3 = ssub.s32 4, 1
    %v4 = vld [vmem:[%s0] sm:%s3]
    %5 = vst [vmem:[#allocation1] sm:%s3] %v4
    %v6 = vld [vmem:[#allocation1] sm:$0x1]
    %vm7 = vcmask 252928
    %8 = vst.msk [vmem:[#allocation0] sm:$0x1] %vm7, %v6
    %s9 = scalar_lea.vmem [#allocation1], 1
    %v10 = vld [vmem:[%s9] sm:$0x1]
    %11 = vrot.lane.b32.xlu0 %v10, 31
    %v12 = vpop.permute.xlu0 %11
    %vm13 = vcmask 507128
    %14 = vst.msk [vmem:[#allocation0] sm:$0x1] %vm13, %v12
    %s16 = ssub.s32 2, 1
    %v17 = vld [vmem:[#allocation0] sm:%s16]
    %s19 = ssub.s32 2, 1
    %20 = vst [vmem:[%s1] sm:%s19] %v17

// kernel: tile.28
$region0: #{tile.28}
  #allocation0 [shape = 's32[1]{0}', space=sflag, size = 0x4, scoped, tag = 'scoped memory for tile.28']
  %s0 = inlined_call_operand.vmem [shape: f32[31], index: 0, kind: input, shape index: {}]
  %s1 = inlined_call_operand.vmem [shape: f32[13,31], index: 1, kind: output, shape index: {}]
  // Predicated region
  $region2: #{tile.28} parent=0 // pred_check
    _
  $region3: #{tile.28} parent=0 // pred_check_branch
    %3 = sbr.rel (0) target = $region5
  $region4: #{tile.28} parent=0 // pred_region
    _
  $region5: #{tile.28} parent=0 // pred_fallthru
    _
  %v4 = vld [vmem:[%s0] ss:$0 sm:$0xff]
  %5 = vst [vmem:[%s1] sm:$0xff] %v4
  %s6 = scalar_lea.vmem %s1, 8
  %7 = vst [vmem:[%s6] sm:$0xff] %v4

// kernel: tile.29
$region0: #{tile.29}
  %s0 = inlined_call_operand.vmem [shape: f32[13,31], index: 0, kind: input, shape index: {}]
  %s1 = inlined_call_operand.vmem [shape: f32[1,403], index: 1, kind: output, shape index: {}]
  $region1: #{tile.29} parent=0
    #allocation0 [shape = 'u8[16384]{0}', space=vmem, size = 0x4000, scoped, tag = 'scoped mem for output reshape']
    %v2 = vld [vmem:[%s0] sm:$0x1]
    %vm3 = vcmask 252928
    %4 = vst.msk [vmem:[#allocation0] sm:$0x1] %vm3, %v2
    %s5 = scalar_lea.vmem %s0, 4
    %v6 = vld [vmem:[%s5] sm:$0x1]
    %s7 = scalar_lea.vmem %s0, 4
    %v8 = vld [vmem:[%s7] sm:$0x1]
    %vm9 = vcmask 31744
    %v10 = vsel %vm9, %v8, %v6
    %11 = vrot.lane.b32.xlu0 %v10, 124
    %v12 = vpop.permute.xlu0 %11
    %vm13 = vcmask 220160
    %s14 = scalar_lea.vmem [#allocation0], 8
    %15 = vst.msk [vmem:[%s14] sm:$0x1] %vm13, %v12
    %vm16 = vcmask 1048544
    %17 = vst.msk [vmem:[#allocation0] sm:$0x1] %vm16, %v12
    %s18 = scalar_lea.vmem %s0, 8
    %v19 = vld [vmem:[%s18] sm:$0x1]
    %s20 = scalar_lea.vmem %s0, 8
    %v21 = vld [vmem:[%s20] sm:$0x1]
    %vm22 = vcmask 64512
    %v23 = vsel %vm22, %v21, %v19
    %24 = vrot.lane.b32.xlu0 %v23, 120
    %v25 = vpop.permute.xlu0 %24
    %vm26 = vcmask 187392
    %s27 = scalar_lea.vmem [#allocation0], 16
    %28 = vst.msk [vmem:[%s27] sm:$0x1] %vm26, %v25
    %vm29 = vcmask 1048512
    %s30 = scalar_lea.vmem [#allocation0], 8
    %31 = vst.msk [vmem:[%s30] sm:$0x1] %vm29, %v25
    %s32 = scalar_lea.vmem %s0, 12
    %v33 = vld [vmem:[%s32] sm:$0x1]
    %s34 = scalar_lea.vmem %s0, 12
    %v35 = vld [vmem:[%s34] sm:$0x1]
    %vm36 = vcmask 97280
    %v37 = vsel %vm36, %v35, %v33
    %38 = vrot.lane.b32.xlu0 %v37, 116
    %v39 = vpop.permute.xlu0 %38
    %vm40 = vcmask 154624
    %s41 = scalar_lea.vmem [#allocation0], 24
    %42 = vst.msk [vmem:[%s41] sm:$0x1] %vm40, %v39
    %vm43 = vcmask 1048480
    %s44 = scalar_lea.vmem [#allocation0], 16
    %45 = vst.msk [vmem:[%s44] sm:$0x1] %vm43, %v39
    %s46 = scalar_lea.vmem %s0, 3
    %v47 = vld [vmem:[%s46] sm:$0x1]
    %48 = vrot.lane.b32.xlu0 %v47, 93
    %v49 = vpop.permute.xlu0 %48
    %vm50 = vcmask 1015528
    %51 = vst.msk [vmem:[#allocation0] sm:$0x1] %vm50, %v49
    %s52 = scalar_lea.vmem %s0, 7
    %v53 = vld [vmem:[%s52] sm:$0x1]
    %54 = vrot.lane.b32.xlu0 %v53, 89
    %v55 = vpop.permute.xlu0 %54
    %vm56 = vcmask 982728
    %s57 = scalar_lea.vmem [#allocation0], 8
    %58 = vst.msk [vmem:[%s57] sm:$0x1] %vm56, %v55
    %s59 = scalar_lea.vmem %s0, 11
    %v60 = vld [vmem:[%s59] sm:$0x1]
    %61 = vrot.lane.b32.xlu0 %v60, 85
    %v62 = vpop.permute.xlu0 %61
    %vm63 = vcmask 949928
    %s64 = scalar_lea.vmem [#allocation0], 16
    %65 = vst.msk [vmem:[%s64] sm:$0x1] %vm63, %v62
    %s66 = scalar_lea.vmem %s0, 2
    %v67 = vld [vmem:[%s66] sm:$0x1]
    %68 = vrot.lane.b32.xlu0 %v67, 62
    %v69 = vpop.permute.xlu0 %68
    %vm70 = vcmask 761328
    %71 = vst.msk [vmem:[#allocation0] sm:$0x1] %vm70, %v69
    %s72 = scalar_lea.vmem %s0, 6
    %v73 = vld [vmem:[%s72] sm:$0x1]
    %74 = vrot.lane.b32.xlu0 %v73, 58
    %v75 = vpop.permute.xlu0 %74
    %vm76 = vcmask 728528
    %s77 = scalar_lea.vmem [#allocation0], 8
    %78 = vst.msk [vmem:[%s77] sm:$0x1] %vm76, %v75
    %s79 = scalar_lea.vmem %s0, 10
    %v80 = vld [vmem:[%s79] sm:$0x1]
    %81 = vrot.lane.b32.xlu0 %v80, 54
    %v82 = vpop.permute.xlu0 %81
    %vm83 = vcmask 695728
    %s84 = scalar_lea.vmem [#allocation0], 16
    %85 = vst.msk [vmem:[%s84] sm:$0x1] %vm83, %v82
    %s86 = scalar_lea.vmem %s0, 1
    %v87 = vld [vmem:[%s86] sm:$0x1]
    %88 = vrot.lane.b32.xlu0 %v87, 31
    %v89 = vpop.permute.xlu0 %88
    %vm90 = vcmask 507128
    %91 = vst.msk [vmem:[#allocation0] sm:$0x1] %vm90, %v89
    %s92 = scalar_lea.vmem %s0, 5
    %v93 = vld [vmem:[%s92] sm:$0x1]
    %94 = vrot.lane.b32.xlu0 %v93, 27
    %v95 = vpop.permute.xlu0 %94
    %vm96 = vcmask 474328
    %s97 = scalar_lea.vmem [#allocation0], 8
    %98 = vst.msk [vmem:[%s97] sm:$0x1] %vm96, %v95
    %s99 = scalar_lea.vmem %s0, 9
    %v100 = vld [vmem:[%s99] sm:$0x1]
    %101 = vrot.lane.b32.xlu0 %v100, 23
    %v102 = vpop.permute.xlu0 %101
    %vm103 = vcmask 441528
    %s104 = scalar_lea.vmem [#allocation0], 16
    %105 = vst.msk [vmem:[%s104] sm:$0x1] %vm103, %v102
    %s107 = ssub.s32 2, 1
    %v108 = vld [vmem:[#allocation0] sm:%s107]
    %s110 = ssub.s32 2, 1
    %111 = vst [vmem:[%s1] sm:%s110] %v108
    %s112 = scalar_lea.vmem [#allocation0], 8
    %v113 = vld [vmem:[%s112] sm:%s107]
    %s115 = ssub.s32 2, 1
    %s116 = scalar_lea.vmem %s1, 1
    %117 = vst [vmem:[%s116] sm:%s115] %v113
    %s118 = scalar_lea.vmem [#allocation0], 16
    %v119 = vld [vmem:[%s118] sm:%s107]
    %s121 = ssub.s32 2, 1
    %s122 = scalar_lea.vmem %s1, 2
    %123 = vst [vmem:[%s122] sm:%s121] %v119
    %s124 = scalar_lea.vmem [#allocation0], 24
    %v125 = vld [vmem:[%s124] sm:%s107]
    %s127 = ssub.s32 2, 1
    %s128 = scalar_lea.vmem %s1, 3
    %129 = vst [vmem:[%s128] sm:%s127] %v125

// kernel: tile.33
$region0: #{tile.33}
  #allocation0 [shape = 's32[1]{0}', space=sflag, size = 0x4, scoped, tag = 'scoped memory for tile.33']
  %s0 = inlined_call_operand.vmem [shape: f32[31], index: 0, kind: input, shape index: {}]
  %s1 = inlined_call_operand.vmem [shape: f32[5,31], index: 1, kind: output, shape index: {}]
  // Predicated region
  $region2: #{tile.33} parent=0 // pred_check
    _
  $region3: #{tile.33} parent=0 // pred_check_branch
    %3 = sbr.rel (0) target = $region5
  $region4: #{tile.33} parent=0 // pred_region
    _
  $region5: #{tile.33} parent=0 // pred_fallthru
    _
  %v4 = vld [vmem:[%s0] ss:$0 sm:$0xff]
  %5 = vst [vmem:[%s1] sm:$0xff] %v4

// kernel: tile.34
$region0: #{tile.34}
  %s0 = inlined_call_operand.vmem [shape: f32[5,31], index: 0, kind: input, shape index: {}]
  %s1 = inlined_call_operand.vmem [shape: f32[1,155], index: 1, kind: output, shape index: {}]
  $region1: #{tile.34} parent=0
    #allocation0 [shape = 'u8[8192]{0}', space=vmem, size = 0x2000, scoped, tag = 'scoped mem for output reshape']
    %v2 = vld [vmem:[%s0] sm:$0x1]
    %vm3 = vcmask 252928
    %4 = vst.msk [vmem:[#allocation0] sm:$0x1] %vm3, %v2
    %s5 = scalar_lea.vmem %s0, 4
    %v6 = vld [vmem:[%s5] sm:$0x1]
    %s7 = scalar_lea.vmem %s0, 4
    %v8 = vld [vmem:[%s7] sm:$0x1]
    %vm9 = vcmask 31744
    %v10 = vsel %vm9, %v8, %v6
    %11 = vrot.lane.b32.xlu0 %v10, 124
    %v12 = vpop.permute.xlu0 %11
    %vm13 = vcmask 220160
    %s14 = scalar_lea.vmem [#allocation0], 8
    %15 = vst.msk [vmem:[%s14] sm:$0x1] %vm13, %v12
    %vm16 = vcmask 1048544
    %17 = vst.msk [vmem:[#allocation0] sm:$0x1] %vm16, %v12
    %s18 = scalar_lea.vmem %s0, 3
    %v19 = vld [vmem:[%s18] sm:$0x1]
    %20 = vrot.lane.b32.xlu0 %v19, 93
    %v21 = vpop.permute.xlu0 %20
    %vm22 = vcmask 1015528
    %23 = vst.msk [vmem:[#allocation0] sm:$0x1] %vm22, %v21
    %s24 = scalar_lea.vmem %s0, 2
    %v25 = vld [vmem:[%s24] sm:$0x1]
    %26 = vrot.lane.b32.xlu0 %v25, 62
    %v27 = vpop.permute.xlu0 %26
    %vm28 = vcmask 761328
    %29 = vst.msk [vmem:[#allocation0] sm:$0x1] %vm28, %v27
    %s30 = scalar_lea.vmem %s0, 1
    %v31 = vld [vmem:[%s30] sm:$0x1]
    %32 = vrot.lane.b32.xlu0 %v31, 31
    %v33 = vpop.permute.xlu0 %32
    %vm34 = vcmask 507128
    %35 = vst.msk [vmem:[#allocation0] sm:$0x1] %vm34, %v33
    %s37 = ssub.s32 2, 1
    %v38 = vld [vmem:[#allocation0] sm:%s37]
    %s40 = ssub.s32 2, 1
    %41 = vst [vmem:[%s1] sm:%s40] %v38
    %s42 = scalar_lea.vmem [#allocation0], 8
    %v43 = vld [vmem:[%s42] sm:%s37]
    %s45 = ssub.s32 2, 1
    %s46 = scalar_lea.vmem %s1, 1
    %47 = vst [vmem:[%s46] sm:%s45] %v43

// kernel: tile.48
$region0: #{tile.48}
  #allocation0 [shape = 's32[1]{0}', space=sflag, size = 0x4, scoped, tag = 'scoped memory for tile.48']
  %s0 = inlined_call_operand.vmem [shape: f32[62], index: 0, kind: input, shape index: {}]
  %s1 = inlined_call_operand.vmem [shape: f32[3,62], index: 1, kind: output, shape index: {}]
  // Predicated region
  $region2: #{tile.48} parent=0 // pred_check
    _
  $region3: #{tile.48} parent=0 // pred_check_branch
    %3 = sbr.rel (0) target = $region5
  $region4: #{tile.48} parent=0 // pred_region
    _
  $region5: #{tile.48} parent=0 // pred_fallthru
    _
  %v4 = vld [vmem:[%s0] ss:$0 sm:$0xff]
  %5 = vst [vmem:[%s1] sm:$0xf] %v4

// kernel: tile.49
$region0: #{tile.49}
  %s0 = inlined_call_operand.vmem [shape: f32[3,62], index: 0, kind: input, shape index: {}]
  %s1 = inlined_call_operand.vmem [shape: f32[1,186], index: 1, kind: output, shape index: {}]
  $region1: #{tile.49} parent=0
    #allocation0 [shape = 'u8[8192]{0}', space=vmem, size = 0x2000, scoped, tag = 'scoped mem for output reshape']
    #allocation1 [shape = 'u8[4096]{0}', space=vmem, size = 0x1000, scoped, tag = 'scoped mem for input reshape']
    %s3 = ssub.s32 16, 1
    %v4 = vld [vmem:[%s0] sm:%s3]
    %5 = vst [vmem:[#allocation1] sm:%s3] %v4
    %v6 = vld [vmem:[#allocation1] sm:$0x1]
    %vm7 = vcmask 506880
    %8 = vst.msk [vmem:[#allocation0] sm:$0x1] %vm7, %v6
    %s9 = scalar_lea.vmem [#allocation1], 2
    %v10 = vld [vmem:[%s9] sm:$0x1]
    %s11 = scalar_lea.vmem [#allocation1], 2
    %v12 = vld [vmem:[%s11] sm:$0x1]
    %vm13 = vcmask 31744
    %v14 = vsel %vm13, %v12, %v10
    %15 = vrot.lane.b32.xlu0 %v14, 124
    %v16 = vpop.permute.xlu0 %15
    %vm17 = vcmask 474112
    %s18 = scalar_lea.vmem [#allocation0], 8
    %19 = vst.msk [vmem:[%s18] sm:$0x1] %vm17, %v16
    %vm20 = vcmask 1048544
    %21 = vst.msk [vmem:[#allocation0] sm:$0x1] %vm20, %v16
    %s22 = scalar_lea.vmem [#allocation1], 1
    %v23 = vld [vmem:[%s22] sm:$0x1]
    %24 = vrot.lane.b32.xlu0 %v23, 62
    %v25 = vpop.permute.xlu0 %24
    %vm26 = vcmask 1015280
    %27 = vst.msk [vmem:[#allocation0] sm:$0x1] %vm26, %v25
    %s29 = ssub.s32 2, 1
    %v30 = vld [vmem:[#allocation0] sm:%s29]
    %s32 = ssub.s32 2, 1
    %33 = vst [vmem:[%s1] sm:%s32] %v30
    %s34 = scalar_lea.vmem [#allocation0], 8
    %v35 = vld [vmem:[%s34] sm:%s29]
    %s37 = ssub.s32 2, 1
    %s38 = scalar_lea.vmem %s1, 1
    %39 = vst [vmem:[%s38] sm:%s37] %v35

// kernel: cnn_encoder_forward.1
$region0: #{cnn_encoder_forward.1}
  #allocation0 [shape = 'u32[]', space=smem, size = 0x4, offset = 0x4, fixed_abs, tag = 'smem constant byte address 0x4 - core index']
  #allocation1 [shape = 'u32[72,128]{1,0:T(1,128)}', space=vmem, size = 0x9000, scoped, tag = 'internal scratch']
  %s0 = inlined_call_operand.vmem [shape: f32[8,30], index: 0, kind: input, shape index: {}]
  %s1 = inlined_call_operand.vmem [shape: f32[30,403], index: 1, kind: input, shape index: {}]
  %s2 = inlined_call_operand.vmem [shape: f32[1,403], index: 2, kind: input, shape index: {}]
  %s3 = inlined_call_operand.vmem [shape: f32[403,155], index: 3, kind: input, shape index: {}]
  %s4 = inlined_call_operand.vmem [shape: f32[1,155], index: 4, kind: input, shape index: {}]
  %s5 = inlined_call_operand.vmem [shape: f32[2,62], index: 5, kind: input, shape index: {}]
  %s6 = inlined_call_operand.vmem [shape: f32[62,186], index: 6, kind: input, shape index: {}]
  %s7 = inlined_call_operand.vmem [shape: f32[1,186], index: 7, kind: input, shape index: {}]
  %s8 = inlined_call_operand.vmem [shape: f32[2,62], index: 8, kind: input, shape index: {}]
  %s9 = inlined_call_operand.vmem [shape: f32[62,124], index: 9, kind: input, shape index: {}]
  %s10 = inlined_call_operand.vmem [shape: f32[1,124], index: 10, kind: input, shape index: {}]
  %s11 = inlined_call_operand.vmem [shape: f32[124,128], index: 11, kind: input, shape index: {}]
  %s12 = inlined_call_operand.vmem [shape: f32[1,128], index: 12, kind: input, shape index: {}]
  %s13 = inlined_call_operand.vmem [shape: f32[8,128], index: 13, kind: output, shape index: {}]
  %s14 = sld [smem:[#allocation0]]
  $region62: #{cnn_encoder_forward.1} parent=0
    _
  %s16 = ssub.s32 1, %s14
  %s17 = scalar_select 0, %s16, %s14
  // Predicated region
  $region2: #{cnn_encoder_forward.1} parent=0 // pred_check
    _
  $region3: #{cnn_encoder_forward.1} parent=0 // pred_check_branch
    %19 = sbr.rel (0) target = $region5
  $region4: #{cnn_encoder_forward.1} parent=0 // pred_region
    _
  $region5: #{cnn_encoder_forward.1} parent=0 // pred_fallthru
    _
  // Predicated region
  $region6: #{cnn_encoder_forward.1} parent=0 // pred_check
    _
  $region7: #{cnn_encoder_forward.1} parent=0 // pred_check_branch
    %21 = sbr.rel (0) target = $region9
  $region8: #{cnn_encoder_forward.1} parent=0 // pred_region
    _
  $region9: #{cnn_encoder_forward.1} parent=0 // pred_fallthru
    _
  // Predicated region
  $region10: #{cnn_encoder_forward.1} parent=0 // pred_check
    _
  $region11: #{cnn_encoder_forward.1} parent=0 // pred_check_branch
    %23 = sbr.rel (0) target = $region13
  $region12: #{cnn_encoder_forward.1} parent=0 // pred_region
    _
  $region13: #{cnn_encoder_forward.1} parent=0 // pred_fallthru
    _
  // Predicated region
  $region14: #{cnn_encoder_forward.1} parent=0 // pred_check
    _
  $region15: #{cnn_encoder_forward.1} parent=0 // pred_check_branch
    %25 = sbr.rel (0) target = $region17
  $region16: #{cnn_encoder_forward.1} parent=0 // pred_region
    _
  $region17: #{cnn_encoder_forward.1} parent=0 // pred_fallthru
    _
  // Predicated region
  $region18: #{cnn_encoder_forward.1} parent=0 // pred_check
    _
  $region19: #{cnn_encoder_forward.1} parent=0 // pred_check_branch
    %27 = sbr.rel (0) target = $region21
  $region20: #{cnn_encoder_forward.1} parent=0 // pred_region
    _
  $region21: #{cnn_encoder_forward.1} parent=0 // pred_fallthru
    _
  // Predicated region
  $region22: #{cnn_encoder_forward.1} parent=0 // pred_check
    _
  $region23: #{cnn_encoder_forward.1} parent=0 // pred_check_branch
    %29 = sbr.rel (0) target = $region25
  $region24: #{cnn_encoder_forward.1} parent=0 // pred_region
    _
  $region25: #{cnn_encoder_forward.1} parent=0 // pred_fallthru
    _
  // Predicated region
  $region26: #{cnn_encoder_forward.1} parent=0 // pred_check
    _
  $region27: #{cnn_encoder_forward.1} parent=0 // pred_check_branch
    %31 = sbr.rel (0) target = $region29
  $region28: #{cnn_encoder_forward.1} parent=0 // pred_region
    _
  $region29: #{cnn_encoder_forward.1} parent=0 // pred_fallthru
    _
  // Predicated region
  $region30: #{cnn_encoder_forward.1} parent=0 // pred_check
    _
  $region31: #{cnn_encoder_forward.1} parent=0 // pred_check_branch
    %33 = sbr.rel (0) target = $region33
  $region32: #{cnn_encoder_forward.1} parent=0 // pred_region
    _
  $region33: #{cnn_encoder_forward.1} parent=0 // pred_fallthru
    _
  // Predicated region
  $region34: #{cnn_encoder_forward.1} parent=0 // pred_check
    _
  $region35: #{cnn_encoder_forward.1} parent=0 // pred_check_branch
    %35 = sbr.rel (0) target = $region37
  $region36: #{cnn_encoder_forward.1} parent=0 // pred_region
    _
  $region37: #{cnn_encoder_forward.1} parent=0 // pred_fallthru
    _
  // Predicated region
  $region38: #{cnn_encoder_forward.1} parent=0 // pred_check
    _
  $region39: #{cnn_encoder_forward.1} parent=0 // pred_check_branch
    %37 = sbr.rel (0) target = $region41
  $region40: #{cnn_encoder_forward.1} parent=0 // pred_region
    _
  $region41: #{cnn_encoder_forward.1} parent=0 // pred_fallthru
    _
  // Predicated region
  $region42: #{cnn_encoder_forward.1} parent=0 // pred_check
    _
  $region43: #{cnn_encoder_forward.1} parent=0 // pred_check_branch
    %39 = sbr.rel (0) target = $region45
  $region44: #{cnn_encoder_forward.1} parent=0 // pred_region
    _
  $region45: #{cnn_encoder_forward.1} parent=0 // pred_fallthru
    _
  // Predicated region
  $region46: #{cnn_encoder_forward.1} parent=0 // pred_check
    _
  $region47: #{cnn_encoder_forward.1} parent=0 // pred_check_branch
    %41 = sbr.rel (0) target = $region49
  $region48: #{cnn_encoder_forward.1} parent=0 // pred_region
    _
  $region49: #{cnn_encoder_forward.1} parent=0 // pred_fallthru
    _
  // Predicated region
  $region50: #{cnn_encoder_forward.1} parent=0 // pred_check
    _
  $region51: #{cnn_encoder_forward.1} parent=0 // pred_check_branch
    %43 = sbr.rel (0) target = $region53
  $region52: #{cnn_encoder_forward.1} parent=0 // pred_region
    _
  $region53: #{cnn_encoder_forward.1} parent=0 // pred_fallthru
    _
  %v44 = vld [vmem:[%s0] sm:$0xff]
  %v45 = vld [vmem:[%s1] sm:$0xff]
  %v46 = vld [vmem:[%s1 + $0x8] sm:$0xff]
  %v47 = vld [vmem:[%s1 + $0x10] sm:$0xff]
  %v48 = vld [vmem:[%s1 + $0x18] sm:$0xff]
  %v49 = vld [vmem:[%s1 + $0x20] sm:$0xff]
  %v50 = vld [vmem:[%s1 + $0x28] sm:$0xff]
  %v51 = vld [vmem:[%s1 + $0x30] sm:$0xff]
  %v52 = vld [vmem:[%s1 + $0x38] sm:$0xff]
  %v53 = vld [vmem:[%s1 + $0x40] sm:$0xff]
  %v54 = vld [vmem:[%s1 + $0x48] sm:$0xff]
  %v55 = vld [vmem:[%s1 + $0x50] sm:$0xff]
  %v56 = vld [vmem:[%s1 + $0x58] sm:$0xff]
  %v57 = vld [vmem:[%s1 + $0x60] sm:$0x3f]
  %v58 = vld [vmem:[%s1 + $0x68] sm:$0x3f]
  %v59 = vld [vmem:[%s1 + $0x70] sm:$0x3f]
  %v60 = vld [vmem:[%s1 + $0x78] sm:$0x3f]
  %v61 = vld [vmem:[%s2] sm:$0xf]
  %v63 = vperm.slane %v61, 0
  %v64 = vperm.slane %v61, 1
  %v65 = vperm.slane %v61, 2
  %v66 = vperm.slane %v61, 3
  %vm71 = vcmask 244736
  %v73 = vsel %vm71, %v44, 0
  %vm75 = vcmask 1045504
  %v77 = vsel %vm75, %v57, 0
  %v80 = vsel %vm75, %v58, 0
  %v83 = vsel %vm75, %v59, 0
  %v86 = vsel %vm75, %v60, 0
  %88 = vmatpush.msra.mxu0 0.0
  %89 = vmatpush.msra.mxu0 0.0
  %90 = vmatpush.msra.mxu0 0.0
  %91 = vmatpush.msra.mxu0 0.0
  %92 = vmatpush.msra.mxu0 0.0
  %93 = vmatpush.msra.mxu0 0.0
  %94 = vmatpush.msra.mxu0 0.0
  %95 = vmatpush.msra.mxu0 0.0
  %96 = vmatpush.msra.mxu0 0.0
  %97 = vmatpush.msra.mxu0 0.0
  %98 = vmatpush.msra.mxu0 0.0
  %99 = vmatpush.msra.mxu0 0.0
  %100 = vmatpush.msra.mxu0 %v77
  %101 = vmatpush.msra.mxu0 %v53
  %102 = vmatpush.msra.mxu0 %v49
  %103 = vmatpush.msra.mxu0 %v45
  %104 = vmatmul.f32.gmra.mxu0 %v73
  %v105 = vpop.f32.mrf.mxu0
  %v106 = vadd.f32 %v63, %v105
  %107 = vdwg.mxu0
  %108 = vmatpush.msra.mxu0 0.0
  %109 = vmatpush.msra.mxu0 0.0
  %110 = vmatpush.msra.mxu0 0.0
  %111 = vmatpush.msra.mxu0 0.0
  %112 = vmatpush.msra.mxu0 0.0
  %113 = vmatpush.msra.mxu0 0.0
  %114 = vmatpush.msra.mxu0 0.0
  %115 = vmatpush.msra.mxu0 0.0
  %116 = vmatpush.msra.mxu0 0.0
  %117 = vmatpush.msra.mxu0 0.0
  %118 = vmatpush.msra.mxu0 0.0
  %119 = vmatpush.msra.mxu0 0.0
  %120 = vmatpush.msra.mxu0 %v80
  %121 = vmatpush.msra.mxu0 %v54
  %122 = vmatpush.msra.mxu0 %v50
  %123 = vmatpush.msra.mxu0 %v46
  %124 = vmatmul.f32.gmra.mxu0 %v73
  %v125 = vpop.f32.mrf.mxu0
  %v126 = vadd.f32 %v64, %v125
  %127 = vdwg.mxu0
  %128 = vmatpush.msra.mxu0 0.0
  %129 = vmatpush.msra.mxu0 0.0
  %130 = vmatpush.msra.mxu0 0.0
  %131 = vmatpush.msra.mxu0 0.0
  %132 = vmatpush.msra.mxu0 0.0
  %133 = vmatpush.msra.mxu0 0.0
  %134 = vmatpush.msra.mxu0 0.0
  %135 = vmatpush.msra.mxu0 0.0
  %136 = vmatpush.msra.mxu0 0.0
  %137 = vmatpush.msra.mxu0 0.0
  %138 = vmatpush.msra.mxu0 0.0
  %139 = vmatpush.msra.mxu0 0.0
  %140 = vmatpush.msra.mxu0 %v83
  %141 = vmatpush.msra.mxu0 %v55
  %142 = vmatpush.msra.mxu0 %v51
  %143 = vmatpush.msra.mxu0 %v47
  %144 = vmatmul.f32.gmra.mxu0 %v73
  %v145 = vpop.f32.mrf.mxu0
  %v146 = vadd.f32 %v65, %v145
  %147 = vdwg.mxu0
  %148 = vmatpush.msra.mxu0 0.0
  %149 = vmatpush.msra.mxu0 0.0
  %150 = vmatpush.msra.mxu0 0.0
  %151 = vmatpush.msra.mxu0 0.0
  %152 = vmatpush.msra.mxu0 0.0
  %153 = vmatpush.msra.mxu0 0.0
  %154 = vmatpush.msra.mxu0 0.0
  %155 = vmatpush.msra.mxu0 0.0
  %156 = vmatpush.msra.mxu0 0.0
  %157 = vmatpush.msra.mxu0 0.0
  %158 = vmatpush.msra.mxu0 0.0
  %159 = vmatpush.msra.mxu0 0.0
  %160 = vmatpush.msra.mxu0 %v86
  %161 = vmatpush.msra.mxu0 %v56
  %162 = vmatpush.msra.mxu0 %v52
  %163 = vmatpush.msra.mxu0 %v48
  %164 = vmatmul.f32.gmra.mxu0 %v73
  %v165 = vpop.f32.mrf.mxu0
  %v166 = vadd.f32 %v66, %v165
  %167 = vdwg.mxu0
  %v168 = vmax.f32 %v106, 0.0
  %v169 = vmax.f32 %v126, 0.0
  %v170 = vmax.f32 %v146, 0.0
  %v171 = vmax.f32 %v166, 0.0
  %v172 = vld [vmem:[%s3] sm:$0xff]
  %v173 = vld [vmem:[%s3 + $0x8] sm:$0xff]
  %v174 = vld [vmem:[%s3 + $0x10] sm:$0xff]
  %v175 = vld [vmem:[%s3 + $0x18] sm:$0xff]
  %v176 = vld [vmem:[%s3 + $0x20] sm:$0xff]
  %v177 = vld [vmem:[%s3 + $0x28] sm:$0xff]
  %v178 = vld [vmem:[%s3 + $0x30] sm:$0xff]
  %v179 = vld [vmem:[%s3 + $0x38] sm:$0xff]
  %v180 = vld [vmem:[%s3 + $0x40] sm:$0xff]
  %v181 = vld [vmem:[%s3 + $0x48] sm:$0xff]
  %v182 = vld [vmem:[%s3 + $0x50] sm:$0xff]
  %v183 = vld [vmem:[%s3 + $0x58] sm:$0xff]
  %v184 = vld [vmem:[%s3 + $0x60] sm:$0xff]
  %v185 = vld [vmem:[%s3 + $0x68] sm:$0xff]
  %v186 = vld [vmem:[%s3 + $0x70] sm:$0xff]
  %v187 = vld [vmem:[%s3 + $0x78] sm:$0xff]
  %v188 = vld [vmem:[%s3 + $0x80] sm:$0xff]
  %v189 = vld [vmem:[%s3 + $0x88] sm:$0xff]
  %v190 = vld [vmem:[%s3 + $0x90] sm:$0xff]
  %v191 = vld [vmem:[%s3 + $0x98] sm:$0xff]
  %v192 = vld [vmem:[%s3 + $0xa0] sm:$0xff]
  %v193 = vld [vmem:[%s3 + $0xa8] sm:$0xff]
  %v194 = vld [vmem:[%s3 + $0xb0] sm:$0xff]
  %v195 = vld [vmem:[%s3 + $0xb8] sm:$0xff]
  %v196 = vld [vmem:[%s3 + $0xc0] sm:$0xff]
  %v197 = vld [vmem:[%s3 + $0xc8] sm:$0xff]
  %v198 = vld [vmem:[%s3 + $0xd0] sm:$0xff]
  %v199 = vld [vmem:[%s3 + $0xd8] sm:$0xff]
  %v200 = vld [vmem:[%s3 + $0xe0] sm:$0xff]
  %v201 = vld [vmem:[%s3 + $0xe8] sm:$0xff]
  %v202 = vld [vmem:[%s3 + $0xf0] sm:$0xff]
  %v203 = vld [vmem:[%s3 + $0xf8] sm:$0xff]
  %v204 = vld [vmem:[%s3 + $0x100] sm:$0xff]
  %v205 = vld [vmem:[%s3 + $0x108] sm:$0xff]
  %v206 = vld [vmem:[%s3 + $0x110] sm:$0xff]
  %v207 = vld [vmem:[%s3 + $0x118] sm:$0xff]
  %v208 = vld [vmem:[%s3 + $0x120] sm:$0xff]
  %v209 = vld [vmem:[%s3 + $0x128] sm:$0xff]
  %v210 = vld [vmem:[%s3 + $0x130] sm:$0xff]
  %v211 = vld [vmem:[%s3 + $0x138] sm:$0xff]
  %v212 = vld [vmem:[%s3 + $0x140] sm:$0xff]
  %v213 = vld [vmem:[%s3 + $0x148] sm:$0xff]
  %v214 = vld [vmem:[%s3 + $0x150] sm:$0xff]
  %v215 = vld [vmem:[%s3 + $0x158] sm:$0xff]
  %v216 = vld [vmem:[%s3 + $0x160] sm:$0xff]
  %v217 = vld [vmem:[%s3 + $0x168] sm:$0xff]
  %v218 = vld [vmem:[%s3 + $0x170] sm:$0xff]
  %v219 = vld [vmem:[%s3 + $0x178] sm:$0xff]
  %v220 = vld [vmem:[%s3 + $0x180] sm:$0xff]
  %v221 = vld [vmem:[%s3 + $0x188] sm:$0xff]
  %v222 = vld [vmem:[%s3 + $0x190] sm:$0xff]
  %v223 = vld [vmem:[%s3 + $0x198] sm:$0xff]
  %v224 = vld [vmem:[%s3 + $0x1a0] sm:$0xff]
  %v225 = vld [vmem:[%s3 + $0x1a8] sm:$0xff]
  %v226 = vld [vmem:[%s3 + $0x1b0] sm:$0xff]
  %v227 = vld [vmem:[%s3 + $0x1b8] sm:$0xff]
  %v228 = vld [vmem:[%s3 + $0x1c0] sm:$0xff]
  %v229 = vld [vmem:[%s3 + $0x1c8] sm:$0xff]
  %v230 = vld [vmem:[%s3 + $0x1d0] sm:$0xff]
  %v231 = vld [vmem:[%s3 + $0x1d8] sm:$0xff]
  %v232 = vld [vmem:[%s3 + $0x1e0] sm:$0xff]
  %v233 = vld [vmem:[%s3 + $0x1e8] sm:$0xff]
  %v234 = vld [vmem:[%s3 + $0x1f0] sm:$0xff]
  %v235 = vld [vmem:[%s3 + $0x1f8] sm:$0xff]
  %v236 = vld [vmem:[%s3 + $0x200] sm:$0xff]
  %v237 = vld [vmem:[%s3 + $0x208] sm:$0xff]
  %v238 = vld [vmem:[%s3 + $0x210] sm:$0xff]
  %v239 = vld [vmem:[%s3 + $0x218] sm:$0xff]
  %v240 = vld [vmem:[%s3 + $0x220] sm:$0xff]
  %v241 = vld [vmem:[%s3 + $0x228] sm:$0xff]
  %v242 = vld [vmem:[%s3 + $0x230] sm:$0xff]
  %v243 = vld [vmem:[%s3 + $0x238] sm:$0xff]
  %v244 = vld [vmem:[%s3 + $0x240] sm:$0xff]
  %v245 = vld [vmem:[%s3 + $0x248] sm:$0xff]
  %v246 = vld [vmem:[%s3 + $0x250] sm:$0xff]
  %v247 = vld [vmem:[%s3 + $0x258] sm:$0xff]
  %v248 = vld [vmem:[%s3 + $0x260] sm:$0xff]
  %v249 = vld [vmem:[%s3 + $0x268] sm:$0xff]
  %v250 = vld [vmem:[%s3 + $0x270] sm:$0xff]
  %v251 = vld [vmem:[%s3 + $0x278] sm:$0xff]
  %v252 = vld [vmem:[%s3 + $0x280] sm:$0xff]
  %v253 = vld [vmem:[%s3 + $0x288] sm:$0xff]
  %v254 = vld [vmem:[%s3 + $0x290] sm:$0xff]
  %v255 = vld [vmem:[%s3 + $0x298] sm:$0xff]
  %v256 = vld [vmem:[%s3 + $0x2a0] sm:$0xff]
  %v257 = vld [vmem:[%s3 + $0x2a8] sm:$0xff]
  %v258 = vld [vmem:[%s3 + $0x2b0] sm:$0xff]
  %v259 = vld [vmem:[%s3 + $0x2b8] sm:$0xff]
  %v260 = vld [vmem:[%s3 + $0x2c0] sm:$0xff]
  %v261 = vld [vmem:[%s3 + $0x2c8] sm:$0xff]
  %v262 = vld [vmem:[%s3 + $0x2d0] sm:$0xff]
  %v263 = vld [vmem:[%s3 + $0x2d8] sm:$0xff]
  %v264 = vld [vmem:[%s3 + $0x2e0] sm:$0xff]
  %v265 = vld [vmem:[%s3 + $0x2e8] sm:$0xff]
  %v266 = vld [vmem:[%s3 + $0x2f0] sm:$0xff]
  %v267 = vld [vmem:[%s3 + $0x2f8] sm:$0xff]
  %v268 = vld [vmem:[%s3 + $0x300] sm:$0xff]
  %v269 = vld [vmem:[%s3 + $0x308] sm:$0xff]
  %v270 = vld [vmem:[%s3 + $0x310] sm:$0xff]
  %v271 = vld [vmem:[%s3 + $0x318] sm:$0xff]
  %v272 = vld [vmem:[%s3 + $0x320] sm:$0x7]
  %v273 = vld [vmem:[%s3 + $0x328] sm:$0x7]
  %v274 = vld [vmem:[%s4] sm:$0x3]
  %v276 = vperm.slane %v274, 0
  %v277 = vperm.slane %v274, 1
  %vm280 = vcmask 154624
  %v282 = vsel %vm280, %v171, 0
  %vm284 = vcmask 1042432
  %v286 = vsel %vm284, %v272, 0
  %v289 = vsel %vm284, %v273, 0
  %291 = vmatpush.msra.mxu0 %v202
  %292 = vmatpush.msra.mxu0 %v200
  %293 = vmatpush.msra.mxu0 %v198
  %294 = vmatpush.msra.mxu0 %v196
  %295 = vmatpush.msra.mxu0 %v194
  %296 = vmatpush.msra.mxu0 %v192
  %297 = vmatpush.msra.mxu0 %v190
  %298 = vmatpush.msra.mxu0 %v188
  %299 = vmatpush.msra.mxu0 %v186
  %300 = vmatpush.msra.mxu0 %v184
  %301 = vmatpush.msra.mxu0 %v182
  %302 = vmatpush.msra.mxu0 %v180
  %303 = vmatpush.msra.mxu0 %v178
  %304 = vmatpush.msra.mxu0 %v176
  %305 = vmatpush.msra.mxu0 %v174
  %306 = vmatpush.msra.mxu0 %v172
  %307 = vmatmul.f32.gmra.mxu0 %v168
  %v308 = vpop.f32.mrf.mxu0
  %v309 = vadd.f32 %v276, %v308
  %310 = vdwg.mxu0
  %311 = vmatpush.msra.mxu0 %v234
  %312 = vmatpush.msra.mxu0 %v232
  %313 = vmatpush.msra.mxu0 %v230
  %314 = vmatpush.msra.mxu0 %v228
  %315 = vmatpush.msra.mxu0 %v226
  %316 = vmatpush.msra.mxu0 %v224
  %317 = vmatpush.msra.mxu0 %v222
  %318 = vmatpush.msra.mxu0 %v220
  %319 = vmatpush.msra.mxu0 %v218
  %320 = vmatpush.msra.mxu0 %v216
  %321 = vmatpush.msra.mxu0 %v214
  %322 = vmatpush.msra.mxu0 %v212
  %323 = vmatpush.msra.mxu0 %v210
  %324 = vmatpush.msra.mxu0 %v208
  %325 = vmatpush.msra.mxu0 %v206
  %326 = vmatpush.msra.mxu0 %v204
  %327 = vmatmul.f32.gmra.mxu0 %v169
  %v328 = vpop.f32.mrf.mxu0
  %v329 = vadd.f32 %v309, %v328
  %330 = vdwg.mxu0
  %331 = vmatpush.msra.mxu0 %v266
  %332 = vmatpush.msra.mxu0 %v264
  %333 = vmatpush.msra.mxu0 %v262
  %334 = vmatpush.msra.mxu0 %v260
  %335 = vmatpush.msra.mxu0 %v258
  %336 = vmatpush.msra.mxu0 %v256
  %337 = vmatpush.msra.mxu0 %v254
  %338 = vmatpush.msra.mxu0 %v252
  %339 = vmatpush.msra.mxu0 %v250
  %340 = vmatpush.msra.mxu0 %v248
  %341 = vmatpush.msra.mxu0 %v246
  %342 = vmatpush.msra.mxu0 %v244
  %343 = vmatpush.msra.mxu0 %v242
  %344 = vmatpush.msra.mxu0 %v240
  %345 = vmatpush.msra.mxu0 %v238
  %346 = vmatpush.msra.mxu0 %v236
  %347 = vmatmul.f32.gmra.mxu0 %v170
  %v348 = vpop.f32.mrf.mxu0
  %v349 = vadd.f32 %v329, %v348
  %350 = vdwg.mxu0
  %351 = vmatpush.msra.mxu0 0.0
  %352 = vmatpush.msra.mxu0 0.0
  %353 = vmatpush.msra.mxu0 0.0
  %354 = vmatpush.msra.mxu0 0.0
  %355 = vmatpush.msra.mxu0 0.0
  %356 = vmatpush.msra.mxu0 0.0
  %357 = vmatpush.msra.mxu0 0.0
  %358 = vmatpush.msra.mxu0 0.0
  %359 = vmatpush.msra.mxu0 0.0
  %360 = vmatpush.msra.mxu0 0.0
  %361 = vmatpush.msra.mxu0 0.0
  %362 = vmatpush.msra.mxu0 0.0
  %363 = vmatpush.msra.mxu0 0.0
  %364 = vmatpush.msra.mxu0 %v286
  %365 = vmatpush.msra.mxu0 %v270
  %366 = vmatpush.msra.mxu0 %v268
  %367 = vmatmul.f32.gmra.mxu0 %v282
  %v368 = vpop.f32.mrf.mxu0
  %v369 = vadd.f32 %v349, %v368
  %370 = vdwg.mxu0
  %371 = vmatpush.msra.mxu0 %v203
  %372 = vmatpush.msra.mxu0 %v201
  %373 = vmatpush.msra.mxu0 %v199
  %374 = vmatpush.msra.mxu0 %v197
  %375 = vmatpush.msra.mxu0 %v195
  %376 = vmatpush.msra.mxu0 %v193
  %377 = vmatpush.msra.mxu0 %v191
  %378 = vmatpush.msra.mxu0 %v189
  %379 = vmatpush.msra.mxu0 %v187
  %380 = vmatpush.msra.mxu0 %v185
  %381 = vmatpush.msra.mxu0 %v183
  %382 = vmatpush.msra.mxu0 %v181
  %383 = vmatpush.msra.mxu0 %v179
  %384 = vmatpush.msra.mxu0 %v177
  %385 = vmatpush.msra.mxu0 %v175
  %386 = vmatpush.msra.mxu0 %v173
  %387 = vmatmul.f32.gmra.mxu0 %v168
  %v388 = vpop.f32.mrf.mxu0
  %v389 = vadd.f32 %v277, %v388
  %390 = vdwg.mxu0
  %391 = vmatpush.msra.mxu0 %v235
  %392 = vmatpush.msra.mxu0 %v233
  %393 = vmatpush.msra.mxu0 %v231
  %394 = vmatpush.msra.mxu0 %v229
  %395 = vmatpush.msra.mxu0 %v227
  %396 = vmatpush.msra.mxu0 %v225
  %397 = vmatpush.msra.mxu0 %v223
  %398 = vmatpush.msra.mxu0 %v221
  %399 = vmatpush.msra.mxu0 %v219
  %400 = vmatpush.msra.mxu0 %v217
  %401 = vmatpush.msra.mxu0 %v215
  %402 = vmatpush.msra.mxu0 %v213
  %403 = vmatpush.msra.mxu0 %v211
  %404 = vmatpush.msra.mxu0 %v209
  %405 = vmatpush.msra.mxu0 %v207
  %406 = vmatpush.msra.mxu0 %v205
  %407 = vmatmul.f32.gmra.mxu0 %v169
  %v408 = vpop.f32.mrf.mxu0
  %v409 = vadd.f32 %v389, %v408
  %410 = vdwg.mxu0
  %411 = vmatpush.msra.mxu0 %v267
  %412 = vmatpush.msra.mxu0 %v265
  %413 = vmatpush.msra.mxu0 %v263
  %414 = vmatpush.msra.mxu0 %v261
  %415 = vmatpush.msra.mxu0 %v259
  %416 = vmatpush.msra.mxu0 %v257
  %417 = vmatpush.msra.mxu0 %v255
  %418 = vmatpush.msra.mxu0 %v253
  %419 = vmatpush.msra.mxu0 %v251
  %420 = vmatpush.msra.mxu0 %v249
  %421 = vmatpush.msra.mxu0 %v247
  %422 = vmatpush.msra.mxu0 %v245
  %423 = vmatpush.msra.mxu0 %v243
  %424 = vmatpush.msra.mxu0 %v241
  %425 = vmatpush.msra.mxu0 %v239
  %426 = vmatpush.msra.mxu0 %v237
  %427 = vmatmul.f32.gmra.mxu0 %v170
  %v428 = vpop.f32.mrf.mxu0
  %v429 = vadd.f32 %v409, %v428
  %430 = vdwg.mxu0
  %431 = vmatpush.msra.mxu0 0.0
  %432 = vmatpush.msra.mxu0 0.0
  %433 = vmatpush.msra.mxu0 0.0
  %434 = vmatpush.msra.mxu0 0.0
  %435 = vmatpush.msra.mxu0 0.0
  %436 = vmatpush.msra.mxu0 0.0
  %437 = vmatpush.msra.mxu0 0.0
  %438 = vmatpush.msra.mxu0 0.0
  %439 = vmatpush.msra.mxu0 0.0
  %440 = vmatpush.msra.mxu0 0.0
  %441 = vmatpush.msra.mxu0 0.0
  %442 = vmatpush.msra.mxu0 0.0
  %443 = vmatpush.msra.mxu0 0.0
  %444 = vmatpush.msra.mxu0 %v289
  %445 = vmatpush.msra.mxu0 %v271
  %446 = vmatpush.msra.mxu0 %v269
  %447 = vmatmul.f32.gmra.mxu0 %v282
  %v448 = vpop.f32.mrf.mxu0
  %v449 = vadd.f32 %v429, %v448
  %450 = vdwg.mxu0
  %v451 = vmax.f32 %v369, 0.0
  %v452 = vmax.f32 %v449, 0.0
  %454 = vrot.lane.b32.xlu0 %v451, 97
  %v455 = vpop.permute.xlu0 %454
  %v457 = vmax.f32 %v451, %v455
  %458 = vrot.lane.b32.xlu0 %v451, 66
  %v459 = vpop.permute.xlu0 %458
  %v461 = vmax.f32 %v457, %v459
  %463 = vrot.lane.b32.xlu0 %v452, 66
  %v464 = vpop.permute.xlu0 %463
  %vm465 = vcmask 539648
  %v466 = vsel %vm465, %v459, %v464
  %v468 = vmax.f32 %v457, %v466
  %470 = vrot.lane.b32.xlu0 %v468, 97
  %v471 = vpop.permute.xlu0 %470
  %vm473 = vcmask 252928
  %v474 = vsel %vm473, %v461, %v471
  %v475 = vld [vmem:[%s5] sm:$0x1]
  %v476 = vperm.slane %v475, 0
  %v477 = vmul.f32 %v474, %v476
  %v478 = vld [vmem:[%s5 + $0x1] sm:$0x1]
  %v479 = vperm.slane %v478, 0
  %v480 = vadd.f32 %v477, %v479
  %v481 = vmax.f32 %v480, 0.0
  %v482 = vld [vmem:[%s6] sm:$0xff]
  %v483 = vld [vmem:[%s6 + $0x8] sm:$0xff]
  %v484 = vld [vmem:[%s6 + $0x10] sm:$0xff]
  %v485 = vld [vmem:[%s6 + $0x18] sm:$0xff]
  %v486 = vld [vmem:[%s6 + $0x20] sm:$0xff]
  %v487 = vld [vmem:[%s6 + $0x28] sm:$0xff]
  %v488 = vld [vmem:[%s6 + $0x30] sm:$0xff]
  %v489 = vld [vmem:[%s6 + $0x38] sm:$0xff]
  %v490 = vld [vmem:[%s6 + $0x40] sm:$0xff]
  %v491 = vld [vmem:[%s6 + $0x48] sm:$0xff]
  %v492 = vld [vmem:[%s6 + $0x50] sm:$0xff]
  %v493 = vld [vmem:[%s6 + $0x58] sm:$0xff]
  %v494 = vld [vmem:[%s6 + $0x60] sm:$0xff]
  %v495 = vld [vmem:[%s6 + $0x68] sm:$0xff]
  %v496 = vld [vmem:[%s6 + $0x70] sm:$0x3f]
  %v497 = vld [vmem:[%s6 + $0x78] sm:$0x3f]
  %v498 = vld [vmem:[%s7] sm:$0x3]
  %v500 = vperm.slane %v498, 0
  %v501 = vperm.slane %v498, 1
  %vm504 = vcmask 506880
  %v506 = vsel %vm504, %v481, 0
  %v509 = vsel %vm75, %v496, 0
  %v512 = vsel %vm75, %v497, 0
  %514 = vmatpush.msra.mxu0 0.0
  %515 = vmatpush.msra.mxu0 0.0
  %516 = vmatpush.msra.mxu0 0.0
  %517 = vmatpush.msra.mxu0 0.0
  %518 = vmatpush.msra.mxu0 0.0
  %519 = vmatpush.msra.mxu0 0.0
  %520 = vmatpush.msra.mxu0 0.0
  %521 = vmatpush.msra.mxu0 0.0
  %522 = vmatpush.msra.mxu0 %v509
  %523 = vmatpush.msra.mxu0 %v494
  %524 = vmatpush.msra.mxu0 %v492
  %525 = vmatpush.msra.mxu0 %v490
  %526 = vmatpush.msra.mxu0 %v488
  %527 = vmatpush.msra.mxu0 %v486
  %528 = vmatpush.msra.mxu0 %v484
  %529 = vmatpush.msra.mxu0 %v482
  %530 = vmatmul.f32.gmra.mxu0 %v506
  %v531 = vpop.f32.mrf.mxu0
  %v532 = vadd.f32 %v500, %v531
  %533 = vdwg.mxu0
  %534 = vmatpush.msra.mxu0 0.0
  %535 = vmatpush.msra.mxu0 0.0
  %536 = vmatpush.msra.mxu0 0.0
  %537 = vmatpush.msra.mxu0 0.0
  %538 = vmatpush.msra.mxu0 0.0
  %539 = vmatpush.msra.mxu0 0.0
  %540 = vmatpush.msra.mxu0 0.0
  %541 = vmatpush.msra.mxu0 0.0
  %542 = vmatpush.msra.mxu0 %v512
  %543 = vmatpush.msra.mxu0 %v495
  %544 = vmatpush.msra.mxu0 %v493
  %545 = vmatpush.msra.mxu0 %v491
  %546 = vmatpush.msra.mxu0 %v489
  %547 = vmatpush.msra.mxu0 %v487
  %548 = vmatpush.msra.mxu0 %v485
  %549 = vmatpush.msra.mxu0 %v483
  %550 = vmatmul.f32.gmra.mxu0 %v506
  %v551 = vpop.f32.mrf.mxu0
  %v552 = vadd.f32 %v501, %v551
  %553 = vdwg.mxu0
  %v554 = vmax.f32 %v532, 0.0
  %v555 = vmax.f32 %v552, 0.0
  %557 = vrot.lane.b32.xlu0 %v554, 66
  %v558 = vpop.permute.xlu0 %557
  %v560 = vmax.f32 %v554, %v558
  %562 = vrot.lane.b32.xlu0 %v554, 4
  %v563 = vpop.permute.xlu0 %562
  %564 = vrot.lane.b32.xlu0 %v555, 4
  %v565 = vpop.permute.xlu0 %564
  %vm566 = vcmask 31744
  %v567 = vsel %vm566, %v563, %v565
  %v569 = vmax.f32 %v560, %v567
  %v570 = vmax.f32 %v569, 0.0
  %v571 = vld [vmem:[%s8] sm:$0x1]
  %v572 = vperm.slane %v571, 0
  %v573 = vmul.f32 %v570, %v572
  %v574 = vld [vmem:[%s8 + $0x1] sm:$0x1]
  %v575 = vperm.slane %v574, 0
  %v576 = vadd.f32 %v573, %v575
  %v577 = vld [vmem:[%s9] sm:$0xff]
  %v578 = vld [vmem:[%s9 + $0x8] sm:$0xff]
  %v579 = vld [vmem:[%s9 + $0x10] sm:$0xff]
  %v580 = vld [vmem:[%s9 + $0x18] sm:$0xff]
  %v581 = vld [vmem:[%s9 + $0x20] sm:$0xff]
  %v582 = vld [vmem:[%s9 + $0x28] sm:$0xff]
  %v583 = vld [vmem:[%s9 + $0x30] sm:$0xff]
  %v584 = vld [vmem:[%s9 + $0x38] sm:$0x3f]
  %v585 = vld [vmem:[%s10] sm:$0x1]
  %v587 = vperm.slane %v585, 0
  %v590 = vsel %vm504, %v576, 0
  %v593 = vsel %vm75, %v584, 0
  %595 = vmatpush.msra.mxu0 0.0
  %596 = vmatpush.msra.mxu0 0.0
  %597 = vmatpush.msra.mxu0 0.0
  %598 = vmatpush.msra.mxu0 0.0
  %599 = vmatpush.msra.mxu0 0.0
  %600 = vmatpush.msra.mxu0 0.0
  %601 = vmatpush.msra.mxu0 0.0
  %602 = vmatpush.msra.mxu0 0.0
  %603 = vmatpush.msra.mxu0 %v593
  %604 = vmatpush.msra.mxu0 %v583
  %605 = vmatpush.msra.mxu0 %v582
  %606 = vmatpush.msra.mxu0 %v581
  %607 = vmatpush.msra.mxu0 %v580
  %608 = vmatpush.msra.mxu0 %v579
  %609 = vmatpush.msra.mxu0 %v578
  %610 = vmatpush.msra.mxu0 %v577
  %611 = vmatmul.f32.gmra.mxu0 %v590
  %v612 = vpop.f32.mrf.mxu0
  %v613 = vadd.f32 %v587, %v612
  %614 = vdwg.mxu0
  %v615 = vmax.f32 %v613, 0.0
  %v616 = vld [vmem:[%s11] sm:$0xff]
  %v617 = vld [vmem:[%s11 + $0x8] sm:$0xff]
  %v618 = vld [vmem:[%s11 + $0x10] sm:$0xff]
  %v619 = vld [vmem:[%s11 + $0x18] sm:$0xff]
  %v620 = vld [vmem:[%s11 + $0x20] sm:$0xff]
  %v621 = vld [vmem:[%s11 + $0x28] sm:$0xff]
  %v622 = vld [vmem:[%s11 + $0x30] sm:$0xff]
  %v623 = vld [vmem:[%s11 + $0x38] sm:$0xff]
  %v624 = vld [vmem:[%s11 + $0x40] sm:$0xff]
  %v625 = vld [vmem:[%s11 + $0x48] sm:$0xff]
  %v626 = vld [vmem:[%s11 + $0x50] sm:$0xff]
  %v627 = vld [vmem:[%s11 + $0x58] sm:$0xff]
  %v628 = vld [vmem:[%s11 + $0x60] sm:$0xff]
  %v629 = vld [vmem:[%s11 + $0x68] sm:$0xff]
  %v630 = vld [vmem:[%s11 + $0x70] sm:$0xff]
  %v631 = vld [vmem:[%s11 + $0x78] sm:$0xf]
  %v632 = vld [vmem:[%s12] sm:$0x1]
  %v634 = vperm.slane %v632, 0
  %vm636 = vcmask 1014784
  %v638 = vsel %vm636, %v615, 0
  %vm640 = vcmask 1043456
  %v642 = vsel %vm640, %v631, 0
  %644 = vmatpush.msra.mxu0 %v642
  %645 = vmatpush.msra.mxu0 %v630
  %646 = vmatpush.msra.mxu0 %v629
  %647 = vmatpush.msra.mxu0 %v628
  %648 = vmatpush.msra.mxu0 %v627
  %649 = vmatpush.msra.mxu0 %v626
  %650 = vmatpush.msra.mxu0 %v625
  %651 = vmatpush.msra.mxu0 %v624
  %652 = vmatpush.msra.mxu0 %v623
  %653 = vmatpush.msra.mxu0 %v622
  %654 = vmatpush.msra.mxu0 %v621
  %655 = vmatpush.msra.mxu0 %v620
  %656 = vmatpush.msra.mxu0 %v619
  %657 = vmatpush.msra.mxu0 %v618
  %658 = vmatpush.msra.mxu0 %v617
  %659 = vmatpush.msra.mxu0 %v616
  %660 = vmatmul.f32.gmra.mxu0 %v638
  %v661 = vpop.f32.mrf.mxu0
  %v662 = vadd.f32 %v634, %v661
  %663 = vdwg.mxu0
  %664 = vst [vmem:[%s13] sm:$0xff] %v662
  // Predicated region
  $region54: #{cnn_encoder_forward.1} parent=0 // pred_check
    _
  $region55: #{cnn_encoder_forward.1} parent=0 // pred_check_branch
    %666 = sbr.rel (0) target = $region57
  $region56: #{cnn_encoder_forward.1} parent=0 // pred_region
    _
  $region57: #{cnn_encoder_forward.1} parent=0 // pred_fallthru
    _
  // Predicated region
  $region58: #{cnn_encoder_forward.1} parent=0 // pred_check
    _
  $region59: #{cnn_encoder_forward.1} parent=0 // pred_check_branch
    %668 = sbr.rel (0) target = $region61
  $region60: #{cnn_encoder_forward.1} parent=0 // pred_region
    _
  $region61: #{cnn_encoder_forward.1} parent=0 // pred_fallthru
    _

</llo_original>
